<compile_context>
chip_gen: v6e
topology: v6e:2x2x1
jax: 0.10.0
libtpu: 0.0.40
codegen_flags: <defaults>
</compile_context>

<pallas_src>
import functools

import numpy as np
import jax
import jax.numpy as jnp
from jax.experimental import pallas as pl
from jax.experimental.pallas import tpu as pltpu


def _stable_sigmoid(x):
    # exp stays on the EUP; this form avoids inf intermediates for large |x|.
    z = jnp.exp(-jnp.abs(x))
    return jnp.where(x >= 0, 1.0 / (1.0 + z), z / (1.0 + z))


def _largest_divisor_at_most(n, m):
    m = max(1, min(n, m))
    for d in range(m, 0, -1):
        if n % d == 0:
            return d
    return 1


# ---------------------------------------------------------------------------
# Kernel 1: fused sigmoid-mask application for BOTH images in one pallas_call.
#   obj = img * sigmoid(logits); back = img - obj  (== img * (1 - sigmoid)).
# ---------------------------------------------------------------------------
def _mask_apply_kernel(imgA_ref, lgA_ref, imgB_ref, lgB_ref,
                       objA_ref, backA_ref, objB_ref, backB_ref):
    def one(img_ref, lg_ref, obj_ref, back_ref):
        img = img_ref[...]                       # (bb, C, HW) f32
        m = _stable_sigmoid(lg_ref[...])         # (bb, 1, HW) f32 (exp on EUP)
        obj = img * m                            # broadcast over C (sublanes)
        obj_ref[...] = obj.astype(obj_ref.dtype)
        back_ref[...] = (img - obj).astype(back_ref.dtype)

    one(imgA_ref, lgA_ref, objA_ref, backA_ref)
    one(imgB_ref, lgB_ref, objB_ref, backB_ref)


def apply_masks_pallas(image_A, mask_A, image_B, mask_B,
                       out_dtype=jnp.float32):
    """image_X: (B, C, H, W) f32, mask_X: (B, 1, H, W) f32 logits
       -> (obj_A, back_A, obj_B, back_B), each (B, C, H, W) in out_dtype.
       (Set out_dtype=jnp.bfloat16 if the downstream backbone runs in bf16 to
        cut output HBM traffic; f32 here to match the f32 reference exactly.)"""
    B, C, H, W = image_A.shape
    HW = H * W
    imgA = image_A.reshape(B, C, HW).astype(jnp.float32)
    imgB = image_B.reshape(B, C, HW).astype(jnp.float32)
    lgA = mask_A.reshape(B, 1, HW).astype(jnp.float32)
    lgB = mask_B.reshape(B, 1, HW).astype(jnp.float32)

    # Batch-block size: amortize the ~0.35 us/step overhead with large blocks,
    # but (a) stay within a conservative double-buffered VMEM budget (counting
    # the C->8 and 1->8 sublane padding) and (b) keep >= 2 grid blocks on the
    # "parallel" axis so both TensorCores get work on v7x.
    pad8 = lambda n: -(-n // 8) * 8
    per_row = 4 * HW * (6 * pad8(C) + 2 * pad8(1)) * 2   # dbl-buffered bytes/row
    bb_budget = max(1, (8 << 20) // per_row)             # ~8 MiB per grid step
    bb_cap = max(1, B // 2)
    bb = _largest_divisor_at_most(B, min(bb_budget, bb_cap))
    grid = (B // bb,)

    img_spec = pl.BlockSpec((bb, C, HW), lambda b: (b, 0, 0))
    lg_spec = pl.BlockSpec((bb, 1, HW), lambda b: (b, 0, 0))
    out_spec = pl.BlockSpec((bb, C, HW), lambda b: (b, 0, 0))
    out_sds = jax.ShapeDtypeStruct((B, C, HW), out_dtype)

    cost = pl.CostEstimate(
        flops=2 * (3 * B * C * HW + 4 * B * HW),
        transcendentals=2 * B * HW,
        bytes_accessed=4 * 2 * (3 * B * C * HW + B * HW),
    )

    objA, backA, objB, backB = pl.pallas_call(
        _mask_apply_kernel,
        out_shape=(out_sds, out_sds, out_sds, out_sds),
        grid_spec=pltpu.PrefetchScalarGridSpec(
            num_scalar_prefetch=0,
            grid=grid,
            in_specs=[img_spec, lg_spec, img_spec, lg_spec],
            out_specs=[out_spec, out_spec, out_spec, out_spec],
        ),
        compiler_params=pltpu.CompilerParams(
            dimension_semantics=("parallel",)),
        cost_estimate=cost,
    )(imgA, lgA, imgB, lgB)

    shape4 = (B, C, H, W)
    return (objA.reshape(shape4), backA.reshape(shape4),
            objB.reshape(shape4), backB.reshape(shape4))


# ---------------------------------------------------------------------------
# Kernel 2: contrastive loss on extracted features, tiled along D (lane dim),
# four separate (B, D) inputs (no jnp.stack), scalar accumulators + pl.when.
# ---------------------------------------------------------------------------
def _coseg_loss_kernel(oa_ref, ob_ref, ba_ref, bb_ref, out_ref,
                       pos_acc, nega_acc, negb_acc, *, threshold, inv_bd):
    j = pl.program_id(0)

    @pl.when(j == 0)
    def _():
        pos_acc[0, 0] = jnp.float32(0.0)
        nega_acc[0, 0] = jnp.float32(0.0)
        negb_acc[0, 0] = jnp.float32(0.0)

    o_a = oa_ref[...]                            # (B, dt) f32
    o_b = ob_ref[...]
    b_a = ba_ref[...]
    b_b = bb_ref[...]

    d_pos = o_a - o_b
    d_a = o_a - b_a
    d_b = o_b - b_b

    pos_acc[0, 0] += jnp.sum(d_pos * d_pos)
    nega_acc[0, 0] += jnp.sum(d_a * d_a)
    negb_acc[0, 0] += jnp.sum(d_b * d_b)

    @pl.when(j == pl.num_programs(0) - 1)
    def _():
        pos = pos_acc[0, 0] * inv_bd
        neg = jnp.maximum(
            jnp.float32(threshold) - (nega_acc[0, 0] + negb_acc[0, 0]) * inv_bd,
            jnp.float32(0.0))
        out_ref[0, 0] = pos + neg


def coseg_loss_pallas(obj_A, back_A, obj_B, back_B, threshold):
    """obj_A/back_A/obj_B/back_B: (B, D) f32 features -> scalar f32 loss."""
    B, D = obj_A.shape
    o_a = obj_A.astype(jnp.float32)
    o_b = obj_B.astype(jnp.float32)
    b_a = back_A.astype(jnp.float32)
    b_b = back_B.astype(jnp.float32)

    # Tile along the feature (lane) dim: block (B, dt) keeps the sublane dim
    # equal to the full B and the lane dim a multiple of 128; >= 2 grid steps
    # (when possible) restore double-buffered DMA/compute overlap and keep the
    # per-step VMEM footprint v7x-safe (64 MiB).
    if D % 128 == 0:
        n = D // 128
        per_chunk = 4 * B * 128 * 4 * 2          # 4 inputs, double-buffered
        budget = max(1, (4 << 20) // per_chunk)
        cap = max(1, n // 2) if n >= 2 else 1
        dt = 128 * _largest_divisor_at_most(n, max(1, min(budget, cap)))
    else:
        dt = D
    grid = (D // dt,)

    kernel = functools.partial(
        _coseg_loss_kernel,
        threshold=float(threshold),
        inv_bd=float(1.0 / (B * D)),
    )
    cost = pl.CostEstimate(
        flops=9 * B * D,
        transcendentals=0,
        bytes_accessed=4 * (4 * B * D + 1),
    )
    feat_spec = pl.BlockSpec((B, dt), lambda j: (0, j))

    out = pl.pallas_call(
        kernel,
        out_shape=jax.ShapeDtypeStruct((1, 1), jnp.float32),
        grid_spec=pltpu.PrefetchScalarGridSpec(
            num_scalar_prefetch=0,
            grid=grid,
            in_specs=[feat_spec, feat_spec, feat_spec, feat_spec],
            out_specs=pl.BlockSpec((1, 1), lambda j: (0, 0)),
            scratch_shapes=[pltpu.VMEM((1, 1), jnp.float32)] * 3,
        ),
        compiler_params=pltpu.CompilerParams(
            dimension_semantics=("arbitrary",)),
        cost_estimate=cost,
    )(o_a, o_b, b_a, b_b)
    return out[0, 0]


# ---------------------------------------------------------------------------
# Stand-in feature extractor (plain JAX) and pure-JAX reference.
# ---------------------------------------------------------------------------
def _stub_extractor(x, proj):
    # TODO(synk): the frozen pretrained ResNet-50 backbone is not translatable
    #             to a self-contained Pallas kernel; this global-average-pool +
    #             fixed random projection only stands in for the demo.
    B, C, H, W = x.shape
    pooled = jnp.mean(x.reshape(B, C, H * W), axis=-1)   # (B, C)
    return pooled @ proj                                  # (B, D)


def _coseg_loss_ref(image_A, image_B, mask_A, mask_B, proj, threshold):
    m_A = _stable_sigmoid(mask_A)
    m_B = _stable_sigmoid(mask_B)
    obj_A = _stub_extractor(image_A * m_A, proj)
    back_A = _stub_extractor(image_A * (1.0 - m_A), proj)
    obj_B = _stub_extractor(image_B * m_B, proj)
    back_B = _stub_extractor(image_B * (1.0 - m_B), proj)
    batch, dim = obj_A.shape
    pos = jnp.sum((obj_A - obj_B) ** 2) / dim / batch
    neg = jnp.maximum(
        0.0,
        threshold
        - (jnp.sum((obj_A - back_A) ** 2) + jnp.sum((obj_B - back_B) ** 2))
        / dim / batch,
    )
    return pos + neg


if __name__ == "__main__":
    B, C, H, W = 2, 3, 16, 16     # small demo shapes; H*W = 256 is lane-dense
    D = 256                        # stand-in feature width (multiple of 128)
    threshold = 1.0                # placeholder for config.THRESHOLD

    key = jax.random.PRNGKey(0)
    k0, k1, k2, k3, k4 = jax.random.split(key, 5)
    image_A = jax.random.normal(k0, (B, C, H, W), jnp.float32)
    image_B = jax.random.normal(k1, (B, C, H, W), jnp.float32)
    mask_A = jax.random.normal(k2, (B, 1, H, W), jnp.float32)
    mask_B = jax.random.normal(k3, (B, 1, H, W), jnp.float32)
    proj = jax.random.normal(k4, (C, D), jnp.float32) / np.sqrt(C)

    # Pallas path: one fused mask kernel -> (stand-in) extractor -> tiled loss kernel.
    obj_A_img, back_A_img, obj_B_img, back_B_img = apply_masks_pallas(
        image_A, mask_A, image_B, mask_B)
    obj_A = _stub_extractor(obj_A_img, proj)
    back_A = _stub_extractor(back_A_img, proj)
    obj_B = _stub_extractor(obj_B_img, proj)
    back_B = _stub_extractor(back_B_img, proj)
    loss = coseg_loss_pallas(obj_A, back_A, obj_B, back_B, threshold)
    loss = jax.block_until_ready(loss)

    # Pure-JAX reference of the same forward.
    ref = _coseg_loss_ref(image_A, image_B, mask_A, mask_B, proj, threshold)
    np.testing.assert_allclose(np.asarray(loss), np.asarray(ref),
                               rtol=1e-5, atol=1e-6)

    print("KERNEL_OK")
</pallas_src>

<mosaic_0001>
module attributes {stable_mosaic.version = 11 : i64} {
  func.func @_mask_apply_kernel(%arg0: i32, %arg1: memref<1x3x256xf32, #tpu.memory_space<vmem>>, %arg2: memref<1x1x256xf32, #tpu.memory_space<vmem>>, %arg3: memref<1x3x256xf32, #tpu.memory_space<vmem>>, %arg4: memref<1x1x256xf32, #tpu.memory_space<vmem>>, %arg5: memref<1x3x256xf32, #tpu.memory_space<vmem>>, %arg6: memref<1x3x256xf32, #tpu.memory_space<vmem>>, %arg7: memref<1x3x256xf32, #tpu.memory_space<vmem>>, %arg8: memref<1x3x256xf32, #tpu.memory_space<vmem>>) attributes {dimension_semantics = [#tpu.dimension_semantics<parallel>], iteration_bounds = array<i64: 2>, scalar_prefetch = 0 : i64, scratch_operands = 0 : i64, tpu.core_type = #tpu.core_type<tc>, window_params = [{transform_indices = @transform_0, window_bounds = array<i64: 1, 3, 256>}, {transform_indices = @transform_1, window_bounds = array<i64: 1, 1, 256>}, {transform_indices = @transform_2, window_bounds = array<i64: 1, 3, 256>}, {transform_indices = @transform_3, window_bounds = array<i64: 1, 1, 256>}, {transform_indices = @transform_4, window_bounds = array<i64: 1, 3, 256>}, {transform_indices = @transform_5, window_bounds = array<i64: 1, 3, 256>}, {transform_indices = @transform_6, window_bounds = array<i64: 1, 3, 256>}, {transform_indices = @transform_7, window_bounds = array<i64: 1, 3, 256>}]} {
    %c0 = arith.constant 0 : index
    %c0_0 = arith.constant 0 : index
    %c0_1 = arith.constant 0 : index
    %0 = vector.load %arg1[%c0, %c0_0, %c0_1] : memref<1x3x256xf32, #tpu.memory_space<vmem>>, vector<1x3x256xf32>
    %c0_2 = arith.constant 0 : index
    %c0_3 = arith.constant 0 : index
    %c0_4 = arith.constant 0 : index
    %1 = vector.load %arg2[%c0_2, %c0_3, %c0_4] : memref<1x1x256xf32, #tpu.memory_space<vmem>>, vector<1x1x256xf32>
    %2 = math.absf %1 : vector<1x1x256xf32>
    %cst = arith.constant 0.000000e+00 : f32
    %3 = vector.broadcast %cst : f32 to vector<1x1x256xf32>
    %4 = arith.subf %3, %2 : vector<1x1x256xf32>
    %5 = math.exp %4 : vector<1x1x256xf32>
    %cst_5 = arith.constant 0.000000e+00 : f32
    %6 = vector.broadcast %cst_5 : f32 to vector<1x1x256xf32>
    %7 = arith.cmpf oge, %1, %6 : vector<1x1x256xf32>
    %cst_6 = arith.constant 1.000000e+00 : f32
    %8 = vector.broadcast %cst_6 : f32 to vector<1x1x256xf32>
    %9 = arith.addf %8, %5 : vector<1x1x256xf32>
    %cst_7 = arith.constant 1.000000e+00 : f32
    %10 = vector.broadcast %cst_7 : f32 to vector<1x1x256xf32>
    %11 = arith.divf %10, %9 : vector<1x1x256xf32>
    %cst_8 = arith.constant 1.000000e+00 : f32
    %12 = vector.broadcast %cst_8 : f32 to vector<1x1x256xf32>
    %13 = arith.addf %12, %5 : vector<1x1x256xf32>
    %14 = arith.divf %5, %13 : vector<1x1x256xf32>
    %15 = arith.select %7, %11, %14 : vector<1x1x256xi1>, vector<1x1x256xf32>
    %16 = vector.broadcast %15 : vector<1x1x256xf32> to vector<1x3x256xf32>
    %17 = arith.mulf %0, %16 : vector<1x3x256xf32>
    %c0_9 = arith.constant 0 : index
    %c0_10 = arith.constant 0 : index
    %c0_11 = arith.constant 0 : index
    %18 = vector.load %arg5[%c0_9, %c0_10, %c0_11] : memref<1x3x256xf32, #tpu.memory_space<vmem>>, vector<1x3x256xf32>
    tpu.vector_store %arg5[%c0_9, %c0_10, %c0_11], %17 {strides = array<i32>} : memref<1x3x256xf32, #tpu.memory_space<vmem>>, vector<1x3x256xf32>,
    %19 = arith.subf %0, %17 : vector<1x3x256xf32>
    %c0_12 = arith.constant 0 : index
    %c0_13 = arith.constant 0 : index
    %c0_14 = arith.constant 0 : index
    %20 = vector.load %arg6[%c0_12, %c0_13, %c0_14] : memref<1x3x256xf32, #tpu.memory_space<vmem>>, vector<1x3x256xf32>
    tpu.vector_store %arg6[%c0_12, %c0_13, %c0_14], %19 {strides = array<i32>} : memref<1x3x256xf32, #tpu.memory_space<vmem>>, vector<1x3x256xf32>,
    %c0_15 = arith.constant 0 : index
    %c0_16 = arith.constant 0 : index
    %c0_17 = arith.constant 0 : index
    %21 = vector.load %arg3[%c0_15, %c0_16, %c0_17] : memref<1x3x256xf32, #tpu.memory_space<vmem>>, vector<1x3x256xf32>
    %c0_18 = arith.constant 0 : index
    %c0_19 = arith.constant 0 : index
    %c0_20 = arith.constant 0 : index
    %22 = vector.load %arg4[%c0_18, %c0_19, %c0_20] : memref<1x1x256xf32, #tpu.memory_space<vmem>>, vector<1x1x256xf32>
    %23 = math.absf %22 : vector<1x1x256xf32>
    %cst_21 = arith.constant 0.000000e+00 : f32
    %24 = vector.broadcast %cst_21 : f32 to vector<1x1x256xf32>
    %25 = arith.subf %24, %23 : vector<1x1x256xf32>
    %26 = math.exp %25 : vector<1x1x256xf32>
    %cst_22 = arith.constant 0.000000e+00 : f32
    %27 = vector.broadcast %cst_22 : f32 to vector<1x1x256xf32>
    %28 = arith.cmpf oge, %22, %27 : vector<1x1x256xf32>
    %cst_23 = arith.constant 1.000000e+00 : f32
    %29 = vector.broadcast %cst_23 : f32 to vector<1x1x256xf32>
    %30 = arith.addf %29, %26 : vector<1x1x256xf32>
    %cst_24 = arith.constant 1.000000e+00 : f32
    %31 = vector.broadcast %cst_24 : f32 to vector<1x1x256xf32>
    %32 = arith.divf %31, %30 : vector<1x1x256xf32>
    %cst_25 = arith.constant 1.000000e+00 : f32
    %33 = vector.broadcast %cst_25 : f32 to vector<1x1x256xf32>
    %34 = arith.addf %33, %26 : vector<1x1x256xf32>
    %35 = arith.divf %26, %34 : vector<1x1x256xf32>
    %36 = arith.select %28, %32, %35 : vector<1x1x256xi1>, vector<1x1x256xf32>
    %37 = vector.broadcast %36 : vector<1x1x256xf32> to vector<1x3x256xf32>
    %38 = arith.mulf %21, %37 : vector<1x3x256xf32>
    %c0_26 = arith.constant 0 : index
    %c0_27 = arith.constant 0 : index
    %c0_28 = arith.constant 0 : index
    %39 = vector.load %arg7[%c0_26, %c0_27, %c0_28] : memref<1x3x256xf32, #tpu.memory_space<vmem>>, vector<1x3x256xf32>
    tpu.vector_store %arg7[%c0_26, %c0_27, %c0_28], %38 {strides = array<i32>} : memref<1x3x256xf32, #tpu.memory_space<vmem>>, vector<1x3x256xf32>,
    %40 = arith.subf %21, %38 : vector<1x3x256xf32>
    %c0_29 = arith.constant 0 : index
    %c0_30 = arith.constant 0 : index
    %c0_31 = arith.constant 0 : index
    %41 = vector.load %arg8[%c0_29, %c0_30, %c0_31] : memref<1x3x256xf32, #tpu.memory_space<vmem>>, vector<1x3x256xf32>
    tpu.vector_store %arg8[%c0_29, %c0_30, %c0_31], %40 {strides = array<i32>} : memref<1x3x256xf32, #tpu.memory_space<vmem>>, vector<1x3x256xf32>,
    return
  }
  func.func @transform_0(%arg0: i32) -> (i32, i32, i32) {
    %c0_i32 = arith.constant 0 : i32
    %c0_i32_0 = arith.constant 0 : i32
    %c0_i32_1 = arith.constant 0 : i32
    return %arg0, %c0_i32, %c0_i32_0 : i32, i32, i32
  }
  func.func @transform_1(%arg0: i32) -> (i32, i32, i32) {
    %c0_i32 = arith.constant 0 : i32
    %c0_i32_0 = arith.constant 0 : i32
    %c0_i32_1 = arith.constant 0 : i32
    return %arg0, %c0_i32, %c0_i32_0 : i32, i32, i32
  }
  func.func @transform_2(%arg0: i32) -> (i32, i32, i32) {
    %c0_i32 = arith.constant 0 : i32
    %c0_i32_0 = arith.constant 0 : i32
    %c0_i32_1 = arith.constant 0 : i32
    return %arg0, %c0_i32, %c0_i32_0 : i32, i32, i32
  }
  func.func @transform_3(%arg0: i32) -> (i32, i32, i32) {
    %c0_i32 = arith.constant 0 : i32
    %c0_i32_0 = arith.constant 0 : i32
    %c0_i32_1 = arith.constant 0 : i32
    return %arg0, %c0_i32, %c0_i32_0 : i32, i32, i32
  }
  func.func @transform_4(%arg0: i32) -> (i32, i32, i32) {
    %c0_i32 = arith.constant 0 : i32
    %c0_i32_0 = arith.constant 0 : i32
    %c0_i32_1 = arith.constant 0 : i32
    return %arg0, %c0_i32, %c0_i32_0 : i32, i32, i32
  }
  func.func @transform_5(%arg0: i32) -> (i32, i32, i32) {
    %c0_i32 = arith.constant 0 : i32
    %c0_i32_0 = arith.constant 0 : i32
    %c0_i32_1 = arith.constant 0 : i32
    return %arg0, %c0_i32, %c0_i32_0 : i32, i32, i32
  }
  func.func @transform_6(%arg0: i32) -> (i32, i32, i32) {
    %c0_i32 = arith.constant 0 : i32
    %c0_i32_0 = arith.constant 0 : i32
    %c0_i32_1 = arith.constant 0 : i32
    return %arg0, %c0_i32, %c0_i32_0 : i32, i32, i32
  }
  func.func @transform_7(%arg0: i32) -> (i32, i32, i32) {
    %c0_i32 = arith.constant 0 : i32
    %c0_i32_0 = arith.constant 0 : i32
    %c0_i32_1 = arith.constant 0 : i32
    return %arg0, %c0_i32, %c0_i32_0 : i32, i32, i32
  }
}

</mosaic_0001>

<llo_original>
// kernel: tpu_custom_call.1
$region0: #{tpu_custom_call.1}
  #allocation0 [shape = 'u32[]', space=smem, size = 0x4, offset = 0x4, fixed_abs, tag = 'smem constant byte address 0x4 - core index']
  #allocation1 [shape = 'u32[144,128]{1,0:T(1,128)}', space=vmem, size = 0x12000, scoped, tag = 'internal scratch']
  %s0 = inlined_call_operand.vmem [shape: f32[2,3,256], index: 0, kind: input, shape index: {}]
  %s1 = inlined_call_operand.vmem [shape: f32[2,1,256], index: 1, kind: input, shape index: {}]
  %s2 = inlined_call_operand.vmem [shape: f32[2,3,256], index: 2, kind: input, shape index: {}]
  %s3 = inlined_call_operand.vmem [shape: f32[2,1,256], index: 3, kind: input, shape index: {}]
  %s4 = inlined_call_operand.vmem [shape: f32[2,3,256], index: 4, kind: output, shape index: {0}]
  %s5 = inlined_call_operand.vmem [shape: f32[2,3,256], index: 5, kind: output, shape index: {1}]
  %s6 = inlined_call_operand.vmem [shape: f32[2,3,256], index: 6, kind: output, shape index: {2}]
  %s7 = inlined_call_operand.vmem [shape: f32[2,3,256], index: 7, kind: output, shape index: {3}]
  %8 = xla_tuple %s4, %s5, %s6, %s7
  %s9 = sld [smem:[#allocation0]]
  $region73: #{tpu_custom_call.1} parent=0
    _
  %s11 = ssub.s32 1, %s9
  %s12 = scalar_select 0, %s11, %s9
  loop: start=0, step=1, limit=4
  $region2: #{tpu_custom_call.1} parent=0 // loop_pre_header
    _
  $region3: #{tpu_custom_call.1} parent=0 // loop_header
    %s14 = sphi 0, %s18
    %p15 = scmp.ge.s32.totalorder %s14, 4
    %s24 = sphi 0, %s26
    %s27 = sphi 0, %s24
    %s28 = sphi 0, %s27
    %s44 = sphi 0, %s28
    %s50 = sphi 0, %s52
    %s53 = sphi 0, %s50
    %s54 = sphi 0, %s53
    %s70 = sphi 0, %s54
    %s76 = sphi 0, %s78
    %s79 = sphi 0, %s76
    %s80 = sphi 0, %s79
    %s96 = sphi 0, %s80
    %s102 = sphi 0, %s104
    %s105 = sphi 0, %s102
    %s106 = sphi 0, %s105
    %s122 = sphi 0, %s106
    %s128 = sphi 0, %s130
    %s131 = sphi 0, %s128
    %s132 = sphi 0, %s131
    %s148 = sphi 0, %s132
    %s154 = sphi 0, %s156
    %s157 = sphi 0, %s154
    %s158 = sphi 0, %s157
    %s174 = sphi 0, %s158
    %s180 = sphi 0, %s182
    %s183 = sphi 0, %s180
    %s184 = sphi 0, %s183
    %s200 = sphi 0, %s184
    %s206 = sphi 0, %s208
    %s209 = sphi 0, %s206
    %s210 = sphi 0, %s209
    %s226 = sphi 0, %s210
  $region4: #{tpu_custom_call.1} parent=0 // loop_header_branch
    %17 = sbr.rel (%p15) target = $region8
  $region5: #{tpu_custom_call.1} parent=0 // loop_body
    %s19 = ssub.s32 %s14, 1
    %s20 = ssub.s32 %s14, 2
    %s21 = sadd.s32 %s14, 1
    %s22 = ssub.s32 %s14, %s21
    %p23 = scmp.eq.s32.totalorder %s22, 0
    %s25 = sadd.s32 %s24, 1
    %s26 = scalar_select %p23, %s24, %s25
    %p29 = pneg %p23
    %p30 = scmp.eq.s32.totalorder %s14, 1
    %p31 = por %p29, %p30
    %p32 = scmp.ne.s32.totalorder %s24, %s27
    %p33 = scmp.eq.s32.totalorder %s14, 0
    %p34 = por %p32, %p33
    %p35 = scmp.ne.s32.totalorder %s24, %s27
    %p36 = scmp.eq.s32.totalorder %s19, 1
    %p37 = por %p35, %p36
    %p38 = scmp.ne.s32.totalorder %s27, %s28
    %p39 = scmp.eq.s32.totalorder %s19, 0
    %p40 = por %p38, %p39
    %p41 = scmp.ne.s32.totalorder %s27, %s28
    %p42 = scmp.eq.s32.totalorder %s20, 1
    %p43 = por %p41, %p42
    %p45 = scmp.ne.s32.totalorder %s28, %s44
    %p46 = scmp.eq.s32.totalorder %s20, 0
    %p47 = por %p45, %p46
    %s48 = ssub.s32 %s14, %s21
    %p49 = scmp.eq.s32.totalorder %s48, 0
    %s51 = sadd.s32 %s50, 1
    %s52 = scalar_select %p49, %s50, %s51
    %p55 = pneg %p49
    %p56 = scmp.eq.s32.totalorder %s14, 1
    %p57 = por %p55, %p56
    %p58 = scmp.ne.s32.totalorder %s50, %s53
    %p59 = scmp.eq.s32.totalorder %s14, 0
    %p60 = por %p58, %p59
    %p61 = scmp.ne.s32.totalorder %s50, %s53
    %p62 = scmp.eq.s32.totalorder %s19, 1
    %p63 = por %p61, %p62
    %p64 = scmp.ne.s32.totalorder %s53, %s54
    %p65 = scmp.eq.s32.totalorder %s19, 0
    %p66 = por %p64, %p65
    %p67 = scmp.ne.s32.totalorder %s53, %s54
    %p68 = scmp.eq.s32.totalorder %s20, 1
    %p69 = por %p67, %p68
    %p71 = scmp.ne.s32.totalorder %s54, %s70
    %p72 = scmp.eq.s32.totalorder %s20, 0
    %p73 = por %p71, %p72
    %s74 = ssub.s32 %s14, %s21
    %p75 = scmp.eq.s32.totalorder %s74, 0
    %s77 = sadd.s32 %s76, 1
    %s78 = scalar_select %p75, %s76, %s77
    %p81 = pneg %p75
    %p82 = scmp.eq.s32.totalorder %s14, 1
    %p83 = por %p81, %p82
    %p84 = scmp.ne.s32.totalorder %s76, %s79
    %p85 = scmp.eq.s32.totalorder %s14, 0
    %p86 = por %p84, %p85
    %p87 = scmp.ne.s32.totalorder %s76, %s79
    %p88 = scmp.eq.s32.totalorder %s19, 1
    %p89 = por %p87, %p88
    %p90 = scmp.ne.s32.totalorder %s79, %s80
    %p91 = scmp.eq.s32.totalorder %s19, 0
    %p92 = por %p90, %p91
    %p93 = scmp.ne.s32.totalorder %s79, %s80
    %p94 = scmp.eq.s32.totalorder %s20, 1
    %p95 = por %p93, %p94
    %p97 = scmp.ne.s32.totalorder %s80, %s96
    %p98 = scmp.eq.s32.totalorder %s20, 0
    %p99 = por %p97, %p98
    %s100 = ssub.s32 %s14, %s21
    %p101 = scmp.eq.s32.totalorder %s100, 0
    %s103 = sadd.s32 %s102, 1
    %s104 = scalar_select %p101, %s102, %s103
    %p107 = pneg %p101
    %p108 = scmp.eq.s32.totalorder %s14, 1
    %p109 = por %p107, %p108
    %p110 = scmp.ne.s32.totalorder %s102, %s105
    %p111 = scmp.eq.s32.totalorder %s14, 0
    %p112 = por %p110, %p111
    %p113 = scmp.ne.s32.totalorder %s102, %s105
    %p114 = scmp.eq.s32.totalorder %s19, 1
    %p115 = por %p113, %p114
    %p116 = scmp.ne.s32.totalorder %s105, %s106
    %p117 = scmp.eq.s32.totalorder %s19, 0
    %p118 = por %p116, %p117
    %p119 = scmp.ne.s32.totalorder %s105, %s106
    %p120 = scmp.eq.s32.totalorder %s20, 1
    %p121 = por %p119, %p120
    %p123 = scmp.ne.s32.totalorder %s106, %s122
    %p124 = scmp.eq.s32.totalorder %s20, 0
    %p125 = por %p123, %p124
    %s126 = ssub.s32 %s14, %s21
    %p127 = scmp.eq.s32.totalorder %s126, 0
    %s129 = sadd.s32 %s128, 1
    %s130 = scalar_select %p127, %s128, %s129
    %p133 = pneg %p127
    %p134 = scmp.eq.s32.totalorder %s14, 1
    %p135 = por %p133, %p134
    %p136 = scmp.ne.s32.totalorder %s128, %s131
    %p137 = scmp.eq.s32.totalorder %s14, 0
    %p138 = por %p136, %p137
    %p139 = scmp.ne.s32.totalorder %s128, %s131
    %p140 = scmp.eq.s32.totalorder %s19, 1
    %p141 = por %p139, %p140
    %p142 = scmp.ne.s32.totalorder %s131, %s132
    %p143 = scmp.eq.s32.totalorder %s19, 0
    %p144 = por %p142, %p143
    %p145 = scmp.ne.s32.totalorder %s131, %s132
    %p146 = scmp.eq.s32.totalorder %s20, 1
    %p147 = por %p145, %p146
    %p149 = scmp.ne.s32.totalorder %s132, %s148
    %p150 = scmp.eq.s32.totalorder %s20, 0
    %p151 = por %p149, %p150
    %s152 = ssub.s32 %s14, %s21
    %p153 = scmp.eq.s32.totalorder %s152, 0
    %s155 = sadd.s32 %s154, 1
    %s156 = scalar_select %p153, %s154, %s155
    %p159 = pneg %p153
    %p160 = scmp.eq.s32.totalorder %s14, 1
    %p161 = por %p159, %p160
    %p162 = scmp.ne.s32.totalorder %s154, %s157
    %p163 = scmp.eq.s32.totalorder %s14, 0
    %p164 = por %p162, %p163
    %p165 = scmp.ne.s32.totalorder %s154, %s157
    %p166 = scmp.eq.s32.totalorder %s19, 1
    %p167 = por %p165, %p166
    %p168 = scmp.ne.s32.totalorder %s157, %s158
    %p169 = scmp.eq.s32.totalorder %s19, 0
    %p170 = por %p168, %p169
    %p171 = scmp.ne.s32.totalorder %s157, %s158
    %p172 = scmp.eq.s32.totalorder %s20, 1
    %p173 = por %p171, %p172
    %p175 = scmp.ne.s32.totalorder %s158, %s174
    %p176 = scmp.eq.s32.totalorder %s20, 0
    %p177 = por %p175, %p176
    %s178 = ssub.s32 %s14, %s21
    %p179 = scmp.eq.s32.totalorder %s178, 0
    %s181 = sadd.s32 %s180, 1
    %s182 = scalar_select %p179, %s180, %s181
    %p185 = pneg %p179
    %p186 = scmp.eq.s32.totalorder %s14, 1
    %p187 = por %p185, %p186
    %p188 = scmp.ne.s32.totalorder %s180, %s183
    %p189 = scmp.eq.s32.totalorder %s14, 0
    %p190 = por %p188, %p189
    %p191 = scmp.ne.s32.totalorder %s180, %s183
    %p192 = scmp.eq.s32.totalorder %s19, 1
    %p193 = por %p191, %p192
    %p194 = scmp.ne.s32.totalorder %s183, %s184
    %p195 = scmp.eq.s32.totalorder %s19, 0
    %p196 = por %p194, %p195
    %p197 = scmp.ne.s32.totalorder %s183, %s184
    %p198 = scmp.eq.s32.totalorder %s20, 1
    %p199 = por %p197, %p198
    %p201 = scmp.ne.s32.totalorder %s184, %s200
    %p202 = scmp.eq.s32.totalorder %s20, 0
    %p203 = por %p201, %p202
    %s204 = ssub.s32 %s14, %s21
    %p205 = scmp.eq.s32.totalorder %s204, 0
    %s207 = sadd.s32 %s206, 1
    %s208 = scalar_select %p205, %s206, %s207
    %p211 = pneg %p205
    %p212 = scmp.eq.s32.totalorder %s14, 1
    %p213 = por %p211, %p212
    %p214 = scmp.ne.s32.totalorder %s206, %s209
    %p215 = scmp.eq.s32.totalorder %s14, 0
    %p216 = por %p214, %p215
    %p217 = scmp.ne.s32.totalorder %s206, %s209
    %p218 = scmp.eq.s32.totalorder %s19, 1
    %p219 = por %p217, %p218
    %p220 = scmp.ne.s32.totalorder %s209, %s210
    %p221 = scmp.eq.s32.totalorder %s19, 0
    %p222 = por %p220, %p221
    %p223 = scmp.ne.s32.totalorder %s209, %s210
    %p224 = scmp.eq.s32.totalorder %s20, 1
    %p225 = por %p223, %p224
    %p227 = scmp.ne.s32.totalorder %s210, %s226
    %p228 = scmp.eq.s32.totalorder %s20, 0
    %p229 = por %p227, %p228
    %p230 = scmp.le.s32.totalorder 1, %s14
    %p231 = scmp.lt.s32.totalorder %s14, 3
    %p232 = pnand %p230, %p231
    %p233 = pneg %p232
    // Predicated region
    $region9: #{tpu_custom_call.1} parent=5 // pred_check
      _
    $region10: #{tpu_custom_call.1} parent=5 // pred_check_branch
      %235 = sbr.rel (%p232) target = $region12
    $region11: #{tpu_custom_call.1} parent=5 // pred_region
      %s236 = ssub.s32 %s14, 1
    $region12: #{tpu_custom_call.1} parent=5 // pred_fallthru
      _
    %p237 = scmp.lt.s32.totalorder %s14, 2
    // Predicated region
    $region13: #{tpu_custom_call.1} parent=5 // pred_check
      %p238 = pneg %p237
    $region14: #{tpu_custom_call.1} parent=5 // pred_check_branch
      %240 = sbr.rel (%p238) target = $region16
    $region15: #{tpu_custom_call.1} parent=5 // pred_region
      // Predicated region
      $region17: #{tpu_custom_call.1} parent=15 // pred_check
        %p241 = pneg %p34
      $region18: #{tpu_custom_call.1} parent=15 // pred_check_branch
        %243 = sbr.rel (%p241) target = $region20
      $region19: #{tpu_custom_call.1} parent=15 // pred_region
        %p244 = scmp.lt.s32.totalorder %s14, 1
        %s245 = scalar_select %p244, %s14, 1
        %s246 = smul.addr %s245, 2
        %s247 = smul.addr %s246, 4
        %s248 = scalar_lea.vmem %s0, %s247
      $region20: #{tpu_custom_call.1} parent=15 // pred_fallthru
        _
      // Predicated region
      $region21: #{tpu_custom_call.1} parent=15 // pred_check
        %p249 = pneg %p60
      $region22: #{tpu_custom_call.1} parent=15 // pred_check_branch
        %251 = sbr.rel (%p249) target = $region24
      $region23: #{tpu_custom_call.1} parent=15 // pred_region
        %p252 = scmp.lt.s32.totalorder %s14, 1
        %s253 = scalar_select %p252, %s14, 1
        %s254 = smul.addr %s253, 2
        %s255 = scalar_lea.vmem %s1, %s254
      $region24: #{tpu_custom_call.1} parent=15 // pred_fallthru
        _
      // Predicated region
      $region25: #{tpu_custom_call.1} parent=15 // pred_check
        %p256 = pneg %p86
      $region26: #{tpu_custom_call.1} parent=15 // pred_check_branch
        %258 = sbr.rel (%p256) target = $region28
      $region27: #{tpu_custom_call.1} parent=15 // pred_region
        %p259 = scmp.lt.s32.totalorder %s14, 1
        %s260 = scalar_select %p259, %s14, 1
        %s261 = smul.addr %s260, 2
        %s262 = smul.addr %s261, 4
        %s263 = scalar_lea.vmem %s2, %s262
      $region28: #{tpu_custom_call.1} parent=15 // pred_fallthru
        _
      // Predicated region
      $region29: #{tpu_custom_call.1} parent=15 // pred_check
        %p264 = pneg %p112
      $region30: #{tpu_custom_call.1} parent=15 // pred_check_branch
        %266 = sbr.rel (%p264) target = $region32
      $region31: #{tpu_custom_call.1} parent=15 // pred_region
        %p267 = scmp.lt.s32.totalorder %s14, 1
        %s268 = scalar_select %p267, %s14, 1
        %s269 = smul.addr %s268, 2
        %s270 = scalar_lea.vmem %s3, %s269
      $region32: #{tpu_custom_call.1} parent=15 // pred_fallthru
        _
    $region16: #{tpu_custom_call.1} parent=5 // pred_fallthru
      _
    %p271 = scmp.le.s32.totalorder 1, %s14
    %p272 = scmp.lt.s32.totalorder %s14, 3
    %p273 = pnand %p271, %p272
    %p274 = pneg %p273
    // Predicated region
    $region33: #{tpu_custom_call.1} parent=5 // pred_check
      _
    $region34: #{tpu_custom_call.1} parent=5 // pred_check_branch
      %276 = sbr.rel (%p273) target = $region36
    $region35: #{tpu_custom_call.1} parent=5 // pred_region
      %s277 = ssub.s32 %s14, 1
      %p278 = scmp.lt.s32.totalorder %s19, 1
      %s279 = scalar_select %p278, %s19, 1
      %s280 = smul.addr %s279, 2
      %s281 = smul.addr %s280, 4
      %s282 = scalar_lea.vmem %s0, %s281
      %p283 = pneg %p40
      %p284 = pneg %p37
      %p285 = scmp.lt.s32.totalorder %s19, 1
      %s286 = scalar_select %p285, %s19, 1
      %s287 = smul.addr %s286, 2
      %s288 = scalar_lea.vmem %s1, %s287
      %p289 = pneg %p66
      %p290 = pneg %p63
      %p291 = scmp.lt.s32.totalorder %s19, 1
      %s292 = scalar_select %p291, %s19, 1
      %s293 = smul.addr %s292, 2
      %s294 = smul.addr %s293, 4
      %s295 = scalar_lea.vmem %s2, %s294
      %p296 = pneg %p92
      %p297 = pneg %p89
      %p298 = scmp.lt.s32.totalorder %s19, 1
      %s299 = scalar_select %p298, %s19, 1
      %s300 = smul.addr %s299, 2
      %s301 = scalar_lea.vmem %s3, %s300
      %p302 = pneg %p118
      %p303 = pneg %p115
      %p304 = pneg %p144
      %p305 = pneg %p141
      %p306 = scmp.lt.s32.totalorder %s19, 1
      %s307 = scalar_select %p306, %s19, 1
      %s308 = smul.addr %s307, 2
      %s309 = smul.addr %s308, 4
      %s310 = scalar_lea.vmem %s4, %s309
      %p311 = pneg %p170
      %p312 = pneg %p167
      %p313 = scmp.lt.s32.totalorder %s19, 1
      %s314 = scalar_select %p313, %s19, 1
      %s315 = smul.addr %s314, 2
      %s316 = smul.addr %s315, 4
      %s317 = scalar_lea.vmem %s5, %s316
      %p318 = pneg %p196
      %p319 = pneg %p193
      %p320 = scmp.lt.s32.totalorder %s19, 1
      %s321 = scalar_select %p320, %s19, 1
      %s322 = smul.addr %s321, 2
      %s323 = smul.addr %s322, 4
      %s324 = scalar_lea.vmem %s6, %s323
      %p325 = pneg %p222
      %p326 = pneg %p219
      %p327 = scmp.lt.s32.totalorder %s19, 1
      %s328 = scalar_select %p327, %s19, 1
      %s329 = smul.addr %s328, 2
      %s330 = smul.addr %s329, 4
      %s331 = scalar_lea.vmem %s7, %s330
      %p332 = scmp.lt.s32.totalorder %s19, 1
      %s333 = scalar_select %p332, %s19, 1
      %s334 = smul.addr %s333, 2
      %s335 = smul.addr %s334, 4
      %s336 = scalar_lea.vmem %s0, %s335
      %p337 = scmp.lt.s32.totalorder %s19, 1
      %s338 = scalar_select %p337, %s19, 1
      %s339 = smul.addr %s338, 2
      %s340 = scalar_lea.vmem %s1, %s339
      %p341 = scmp.lt.s32.totalorder %s19, 1
      %s342 = scalar_select %p341, %s19, 1
      %s343 = smul.addr %s342, 2
      %s344 = smul.addr %s343, 4
      %s345 = scalar_lea.vmem %s2, %s344
      %p346 = scmp.lt.s32.totalorder %s19, 1
      %s347 = scalar_select %p346, %s19, 1
      %s348 = smul.addr %s347, 2
      %s349 = scalar_lea.vmem %s3, %s348
      %p350 = scmp.lt.s32.totalorder %s19, 1
      %s351 = scalar_select %p350, %s19, 1
      %s352 = smul.addr %s351, 2
      %s353 = smul.addr %s352, 4
      %s354 = scalar_lea.vmem %s4, %s353
      %p355 = scmp.lt.s32.totalorder %s19, 1
      %s356 = scalar_select %p355, %s19, 1
      %s357 = smul.addr %s356, 2
      %s358 = smul.addr %s357, 4
      %s359 = scalar_lea.vmem %s5, %s358
      %p360 = scmp.lt.s32.totalorder %s19, 1
      %s361 = scalar_select %p360, %s19, 1
      %s362 = smul.addr %s361, 2
      %s363 = smul.addr %s362, 4
      %s364 = scalar_lea.vmem %s6, %s363
      %p365 = scmp.lt.s32.totalorder %s19, 1
      %s366 = scalar_select %p365, %s19, 1
      %s367 = smul.addr %s366, 2
      %s368 = smul.addr %s367, 4
      %s369 = scalar_lea.vmem %s7, %s368
      %v370 = vld [vmem:[%s336] sm:$0x77]
      %v371 = vld [vmem:[%s340] sm:$0x3]
      %v372 = vand.u32 2147483647, %v371
      %v373 = vsub.f32 0.0, %v372
      %v374 = vmul.f32 %v373, 1.442695
      %v375 = vpow.pop %v374
      %vm376 = vcmp.ge.f32.partialorder %v371, 0.0
      %v377 = vadd.f32 %v375, 1.0
      %v378 = vrcp.pop %v377
      %v379 = vmul.f32 1.0, %v378
      %v380 = vmul.f32 %v375, %v378
      %v381 = vsel %vm376, %v379, %v380
      %v383 = vlaneseq
      %v384 = vshrl.u32 %v383, 7
      %v385 = vsub.s32 0, %v384
      %v386 = vrot.slane %v381, %v385
      %v387 = vlaneseq
      %v388 = vshrl.u32 %v387, 7
      %v389 = vsub.s32 1, %v388
      %v390 = vrot.slane %v381, %v389
      %v391 = vcombine.low %v386, %v390
      %v393 = vmul.f32 %v370, %v391
      %394 = vst [vmem:[%s354] sm:$0x77] %v393
      %v395 = vsub.f32 %v370, %v393
      %396 = vst [vmem:[%s359] sm:$0x77] %v395
      %v397 = vld [vmem:[%s345] sm:$0x77]
      %v398 = vld [vmem:[%s349] sm:$0x3]
      %v399 = vand.u32 2147483647, %v398
      %v400 = vsub.f32 0.0, %v399
      %v401 = vmul.f32 %v400, 1.442695
      %v402 = vpow.pop %v401
      %vm403 = vcmp.ge.f32.partialorder %v398, 0.0
      %v404 = vadd.f32 %v402, 1.0
      %v405 = vrcp.pop %v404
      %v406 = vmul.f32 1.0, %v405
      %v407 = vmul.f32 %v402, %v405
      %v408 = vsel %vm403, %v406, %v407
      %v410 = vlaneseq
      %v411 = vshrl.u32 %v410, 7
      %v412 = vsub.s32 0, %v411
      %v413 = vrot.slane %v408, %v412
      %v414 = vlaneseq
      %v415 = vshrl.u32 %v414, 7
      %v416 = vsub.s32 1, %v415
      %v417 = vrot.slane %v408, %v416
      %v418 = vcombine.low %v413, %v417
      %v420 = vmul.f32 %v397, %v418
      %421 = vst [vmem:[%s364] sm:$0x77] %v420
      %v422 = vsub.f32 %v397, %v420
      %423 = vst [vmem:[%s369] sm:$0x77] %v422
      %p424 = scmp.lt.s32.totalorder %s19, 1
      %s425 = scalar_select %p424, %s19, 1
      %s426 = smul.addr %s425, 2
      %s427 = smul.addr %s426, 4
      %s428 = scalar_lea.vmem %s4, %s427
      %p429 = scmp.lt.s32.totalorder %s19, 1
      %s430 = scalar_select %p429, %s19, 1
      %s431 = smul.addr %s430, 2
      %s432 = smul.addr %s431, 4
      %s433 = scalar_lea.vmem %s5, %s432
      %p434 = scmp.lt.s32.totalorder %s19, 1
      %s435 = scalar_select %p434, %s19, 1
      %s436 = smul.addr %s435, 2
      %s437 = smul.addr %s436, 4
      %s438 = scalar_lea.vmem %s6, %s437
      %p439 = scmp.lt.s32.totalorder %s19, 1
      %s440 = scalar_select %p439, %s19, 1
      %s441 = smul.addr %s440, 2
      %s442 = smul.addr %s441, 4
      %s443 = scalar_lea.vmem %s7, %s442
      // Predicated region
      $region37: #{tpu_custom_call.1} parent=35 // pred_check
        %p444 = pneg %p141
      $region38: #{tpu_custom_call.1} parent=35 // pred_check_branch
        %446 = sbr.rel (%p444) target = $region40
      $region39: #{tpu_custom_call.1} parent=35 // pred_region
        _
      $region40: #{tpu_custom_call.1} parent=35 // pred_fallthru
        _
      // Predicated region
      $region41: #{tpu_custom_call.1} parent=35 // pred_check
        %p447 = pneg %p167
      $region42: #{tpu_custom_call.1} parent=35 // pred_check_branch
        %449 = sbr.rel (%p447) target = $region44
      $region43: #{tpu_custom_call.1} parent=35 // pred_region
        _
      $region44: #{tpu_custom_call.1} parent=35 // pred_fallthru
        _
      // Predicated region
      $region45: #{tpu_custom_call.1} parent=35 // pred_check
        %p450 = pneg %p193
      $region46: #{tpu_custom_call.1} parent=35 // pred_check_branch
        %452 = sbr.rel (%p450) target = $region48
      $region47: #{tpu_custom_call.1} parent=35 // pred_region
        _
      $region48: #{tpu_custom_call.1} parent=35 // pred_fallthru
        _
      // Predicated region
      $region49: #{tpu_custom_call.1} parent=35 // pred_check
        %p453 = pneg %p219
      $region50: #{tpu_custom_call.1} parent=35 // pred_check_branch
        %455 = sbr.rel (%p453) target = $region52
      $region51: #{tpu_custom_call.1} parent=35 // pred_region
        _
      $region52: #{tpu_custom_call.1} parent=35 // pred_fallthru
        _
    $region36: #{tpu_custom_call.1} parent=5 // pred_fallthru
      _
    %p456 = scmp.le.s32.totalorder 2, %s14
    // Predicated region
    $region53: #{tpu_custom_call.1} parent=5 // pred_check
      %p457 = pneg %p456
    $region54: #{tpu_custom_call.1} parent=5 // pred_check_branch
      %459 = sbr.rel (%p457) target = $region56
    $region55: #{tpu_custom_call.1} parent=5 // pred_region
      %s460 = ssub.s32 %s14, 2
      // Predicated region
      $region57: #{tpu_custom_call.1} parent=55 // pred_check
        %p461 = pneg %p147
      $region58: #{tpu_custom_call.1} parent=55 // pred_check_branch
        %463 = sbr.rel (%p461) target = $region60
      $region59: #{tpu_custom_call.1} parent=55 // pred_region
        %p464 = scmp.lt.s32.totalorder %s20, 1
        %s465 = scalar_select %p464, %s20, 1
        %s466 = smul.addr %s465, 2
        %s467 = smul.addr %s466, 4
        %s468 = scalar_lea.vmem %s4, %s467
      $region60: #{tpu_custom_call.1} parent=55 // pred_fallthru
        _
      // Predicated region
      $region61: #{tpu_custom_call.1} parent=55 // pred_check
        %p469 = pneg %p173
      $region62: #{tpu_custom_call.1} parent=55 // pred_check_branch
        %471 = sbr.rel (%p469) target = $region64
      $region63: #{tpu_custom_call.1} parent=55 // pred_region
        %p472 = scmp.lt.s32.totalorder %s20, 1
        %s473 = scalar_select %p472, %s20, 1
        %s474 = smul.addr %s473, 2
        %s475 = smul.addr %s474, 4
        %s476 = scalar_lea.vmem %s5, %s475
      $region64: #{tpu_custom_call.1} parent=55 // pred_fallthru
        _
      // Predicated region
      $region65: #{tpu_custom_call.1} parent=55 // pred_check
        %p477 = pneg %p199
      $region66: #{tpu_custom_call.1} parent=55 // pred_check_branch
        %479 = sbr.rel (%p477) target = $region68
      $region67: #{tpu_custom_call.1} parent=55 // pred_region
        %p480 = scmp.lt.s32.totalorder %s20, 1
        %s481 = scalar_select %p480, %s20, 1
        %s482 = smul.addr %s481, 2
        %s483 = smul.addr %s482, 4
        %s484 = scalar_lea.vmem %s6, %s483
      $region68: #{tpu_custom_call.1} parent=55 // pred_fallthru
        _
      // Predicated region
      $region69: #{tpu_custom_call.1} parent=55 // pred_check
        %p485 = pneg %p225
      $region70: #{tpu_custom_call.1} parent=55 // pred_check_branch
        %487 = sbr.rel (%p485) target = $region72
      $region71: #{tpu_custom_call.1} parent=55 // pred_region
        %p488 = scmp.lt.s32.totalorder %s20, 1
        %s489 = scalar_select %p488, %s20, 1
        %s490 = smul.addr %s489, 2
        %s491 = smul.addr %s490, 4
        %s492 = scalar_lea.vmem %s7, %s491
      $region72: #{tpu_custom_call.1} parent=55 // pred_fallthru
        _
    $region56: #{tpu_custom_call.1} parent=5 // pred_fallthru
      _
  $region6: #{tpu_custom_call.1} parent=0 // loop_footer
    %s18 = sadd.s32 1, %s14
  $region7: #{tpu_custom_call.1} parent=0 // loop_footer_branch
    %13 = sbr.rel target = $region3
  $region8: #{tpu_custom_call.1} parent=0 // loop_exit
    _

</llo_original>
